<compile_context>
chip_gen: v5e
topology: v5e:2x2
jax: 0.10.0
libtpu: 0.0.40
codegen_flags: <defaults>
</compile_context>

<pallas_src>
import functools

import jax
import jax.numpy as jnp
from jax import lax
from jax.experimental import pallas as pl
from jax.experimental.pallas import tpu as pltpu

_LANE = 128
_SUBLANE = 8


def _round_down(x, m):
    return (x // m) * m


def _default_num_parallel():
    """Best-effort TensorCore count: 2 on v7x (megacore split pays off),
    1 on v5e/v6e (a parallel axis there only adds grid steps)."""
    try:
        info = pltpu.get_tpu_info()
        for attr in ("num_cores", "core_count", "tensorcores_per_chip",
                     "num_tensorcores"):
            n = getattr(info, attr, None)
            if n:
                return max(1, int(n))
    except Exception:
        pass
    return 1


def _sumsq_kernel(z_ref, out_ref, *, g_red, tr, rows, needs_mask):
    p = pl.program_id(0)          # parallel chunk index
    k = pl.program_id(1)          # reduction tile index within the chunk

    @pl.when(k == 0)
    def _init():
        out_ref[...] = jnp.zeros_like(out_ref)

    zf = z_ref[...].astype(jnp.float32)            # (TR, 128), full vregs
    sq = zf * zf
    if needs_mask:
        # Only emitted when the tiling is ragged (edge tile and/or a clamped
        # phantom tile from an uneven parallel split): zero rows logically
        # past `rows`.  ~3 VPU ops per vreg, well inside the slack of this
        # HBM-bound kernel.
        row0 = (p * g_red + k) * tr
        row = row0 + lax.broadcasted_iota(jnp.int32, sq.shape, 0)
        sq = jnp.where(row < rows, sq, 0.0)

    # Vreg-shaped partial accumulation: pure VPU adds into the resident
    # (8,128) output block.  The final cross-lane/sublane reduction happens
    # once in the JAX epilogue (keeps the XLU out of the hot loop and gives a
    # 1024-way partial sum for better f32 accuracy on very long N).
    out_ref[...] += jnp.sum(sq.reshape(-1, _SUBLANE, _LANE), axis=0)


def _sumsq_pallas(z2d, target_block_bytes, num_parallel):
    """Sum of squares of a dense (rows, 128) slab, rows >= 8."""
    rows = z2d.shape[0]
    itemsize = z2d.dtype.itemsize

    # Tile rows: target ~target_block_bytes of input DMA per grid step
    # (multiple of 8 sublanes), capped so double-buffered input plus generous
    # headroom for f32 intermediates stays under the 32 MiB budget.
    budget = 32 << 20
    headroom = 2 << 20
    tr = _round_down(max(target_block_bytes // (_LANE * itemsize), _SUBLANE),
                     _SUBLANE)
    per_row_bytes = _LANE * (2 * itemsize + 3 * 4)   # 2 input bufs + 3 f32 tmp
    tr_cap = _round_down(max((budget - headroom) // per_row_bytes, _SUBLANE),
                         _SUBLANE)
    tr = max(_SUBLANE, min(tr, tr_cap, _round_down(rows, _SUBLANE)))

    n_tiles = int(pl.cdiv(rows, tr))

    g_par = num_parallel if num_parallel is not None else _default_num_parallel()
    g_par = max(1, min(int(g_par), n_tiles))
    g_red = int(pl.cdiv(n_tiles, g_par))
    # Mask needed iff the logical tiling overshoots the real rows (ragged edge
    # tile and/or a clamped phantom tile).
    needs_mask = (g_par * g_red * tr) != rows

    def z_index_map(p, k):
        # Clamp so phantom / edge tiles never issue an out-of-range DMA; the
        # in-kernel row mask zeroes anything logically past `rows`.
        return (jnp.minimum(p * g_red + k, n_tiles - 1), 0)

    kernel = functools.partial(_sumsq_kernel, g_red=g_red, tr=tr, rows=rows,
                               needs_mask=needs_mask)

    tile_in_bytes = tr * _LANE * itemsize
    tile_f32_bytes = tr * _LANE * 4
    vmem_limit = int(min(budget,
                         max(4 << 20,
                             2 * tile_in_bytes + 3 * tile_f32_bytes + headroom)))

    cost = pl.CostEstimate(
        flops=2 * rows * _LANE,
        transcendentals=0,
        bytes_accessed=rows * _LANE * itemsize + g_par * _SUBLANE * _LANE * 4,
    )

    partials = pl.pallas_call(
        kernel,
        out_shape=jax.ShapeDtypeStruct((g_par * _SUBLANE, _LANE), jnp.float32),
        grid=(g_par, g_red),
        in_specs=[pl.BlockSpec((tr, _LANE), z_index_map)],
        out_specs=pl.BlockSpec((_SUBLANE, _LANE), lambda p, k: (p, 0)),
        compiler_params=pltpu.CompilerParams(
            dimension_semantics=("parallel", "arbitrary"),
            vmem_limit_bytes=vmem_limit,
        ),
        cost_estimate=cost,
    )(z2d)

    # Single cross-lane/sublane reduction, done once outside the hot loop.
    return jnp.sum(partials)


def waveglow_loss(z, logdet, sigma=1.0, elementwise_mean=True,
                  target_block_bytes=4 << 20, num_parallel=None):
    """Pallas WaveGlowLoss. z: (B, N), logdet: (B,) -> scalar f32 loss."""
    B, N = z.shape
    total = B * N
    sigma2_2 = 2.0 * float(sigma) ** 2

    if total % _LANE == 0 and total >= _SUBLANE * _LANE:
        # Free row-major reshape to a lane-dense slab; no HBM data movement.
        z2d = z.reshape(total // _LANE, _LANE)
        total_sq = _sumsq_pallas(z2d, target_block_bytes, num_parallel)
    else:
        # Degenerate / lane-unaligned shapes: a dense-slab view would force an
        # HBM pad or slice copy of z, so let XLA do the reduction directly.
        total_sq = jnp.sum(z.astype(jnp.float32) ** 2)

    # Tiny scalar epilogue: combine the partial sum, logdet and the divisions
    # exactly once (mathematically identical to the reference).
    loss = total_sq / (sigma2_2 * B) - jnp.mean(logdet.astype(jnp.float32))
    if elementwise_mean:
        loss = loss / N
    return loss


def waveglow_loss_ref(z, logdet, sigma=1.0, elementwise_mean=True):
    sigma2_2 = 2.0 * float(sigma) ** 2
    loss = (jnp.sum(z.astype(jnp.float32) ** 2, axis=1) / sigma2_2
            - logdet.astype(jnp.float32))
    loss = jnp.mean(loss)
    if elementwise_mean:
        loss = loss / z.shape[1]
    return loss


if __name__ == "__main__":
    key = jax.random.PRNGKey(0)

    cases = [
        # (B, N, dtype, sigma, elementwise_mean, target_block_bytes, num_parallel)
        (4, 256, jnp.float32, 1.0, True, 4 << 20, None),   # single-tile path
        (2, 8192, jnp.float32, 1.0, True, 8192, 2),        # 2 chunks x 4 tiles
        (3, 1152, jnp.float32, 0.5, False, 4096, 1),       # ragged rows -> edge mask
        (2, 4096, jnp.bfloat16, 1.2, True, 4096, None),    # bf16 in, f32 accumulate
        (2, 100, jnp.float32, 1.0, True, 4 << 20, None),   # lane-unaligned -> JAX fallback
    ]

    for i, (B, N, dt, sigma, em, tb, npar) in enumerate(cases):
        kz, kl, key = jax.random.split(key, 3)
        z = jax.random.normal(kz, (B, N), dtype=jnp.float32).astype(dt)
        logdet = jax.random.normal(kl, (B,), dtype=jnp.float32)
        got = jax.block_until_ready(
            waveglow_loss(z, logdet, sigma=sigma, elementwise_mean=em,
                          target_block_bytes=tb, num_parallel=npar))
        want = jax.block_until_ready(
            waveglow_loss_ref(z, logdet, sigma=sigma, elementwise_mean=em))
        tol = 1e-4 if dt == jnp.bfloat16 else 1e-5
        assert jnp.allclose(got, want, rtol=tol, atol=tol), (i, got, want)

    print("KERNEL_OK")
</pallas_src>

<mosaic_0001>
module attributes {stable_mosaic.version = 11 : i64} {
  func.func @_sumsq_kernel(%arg0: i32, %arg1: i32, %arg2: memref<8x128xf32, #tpu.memory_space<vmem>>, %arg3: memref<8x128xf32, #tpu.memory_space<vmem>>) attributes {dimension_semantics = [#tpu.dimension_semantics<parallel>, #tpu.dimension_semantics<arbitrary>], iteration_bounds = array<i64: 1, 1>, scalar_prefetch = 0 : i64, scratch_operands = 0 : i64, tpu.core_type = #tpu.core_type<tc>, window_params = [{transform_indices = @transform_0, window_bounds = array<i64: 8, 128>}, {transform_indices = @transform_1, window_bounds = array<i64: 8, 128>}]} {
    %c0_i32 = arith.constant 0 : i32
    %0 = arith.cmpi eq, %arg1, %c0_i32 : i32
    %1 = arith.extui %0 : i1 to i32
    %c0_i32_0 = arith.constant 0 : i32
    %2 = arith.cmpi ne, %1, %c0_i32_0 : i32
    scf.if %2 {
      %cst_6 = arith.constant 0.000000e+00 : f32
      %10 = vector.broadcast %cst_6 : f32 to vector<8x128xf32>
      %c0_7 = arith.constant 0 : index
      %c0_8 = arith.constant 0 : index
      %11 = vector.load %arg3[%c0_7, %c0_8] : memref<8x128xf32, #tpu.memory_space<vmem>>, vector<8x128xf32>
      tpu.vector_store %arg3[%c0_7, %c0_8], %10 {strides = array<i32>} : memref<8x128xf32, #tpu.memory_space<vmem>>, vector<8x128xf32>,
    } else {
    }
    %c0 = arith.constant 0 : index
    %c0_1 = arith.constant 0 : index
    %3 = vector.load %arg2[%c0, %c0_1] : memref<8x128xf32, #tpu.memory_space<vmem>>, vector<8x128xf32>
    %4 = arith.mulf %3, %3 : vector<8x128xf32>
    %c0_2 = arith.constant 0 : index
    %c0_3 = arith.constant 0 : index
    %5 = vector.load %arg3[%c0_2, %c0_3] : memref<8x128xf32, #tpu.memory_space<vmem>>, vector<8x128xf32>
    %6 = vector.shape_cast %4 : vector<8x128xf32> to vector<1x8x128xf32>
    %cst = arith.constant dense<0.000000e+00> : vector<8x128xf32>
    %7 = vector.multi_reduction <add>, %6, %cst [0] : vector<1x8x128xf32> to vector<8x128xf32>
    %8 = arith.addf %5, %7 : vector<8x128xf32>
    %c0_4 = arith.constant 0 : index
    %c0_5 = arith.constant 0 : index
    %9 = vector.load %arg3[%c0_4, %c0_5] : memref<8x128xf32, #tpu.memory_space<vmem>>, vector<8x128xf32>
    tpu.vector_store %arg3[%c0_4, %c0_5], %8 {strides = array<i32>} : memref<8x128xf32, #tpu.memory_space<vmem>>, vector<8x128xf32>,
    return
  }
  func.func @transform_0(%arg0: i32, %arg1: i32) -> (i32, i32) {
    %c1_i32 = arith.constant 1 : i32
    %0 = arith.muli %arg0, %c1_i32 : i32
    %1 = arith.addi %0, %arg1 : i32
    %c0_i32 = arith.constant 0 : i32
    %2 = arith.minsi %1, %c0_i32 : i32
    %c0_i32_0 = arith.constant 0 : i32
    %c0_i32_1 = arith.constant 0 : i32
    return %2, %c0_i32_0 : i32, i32
  }
  func.func @transform_1(%arg0: i32, %arg1: i32) -> (i32, i32) {
    %c0_i32 = arith.constant 0 : i32
    %c0_i32_0 = arith.constant 0 : i32
    return %arg0, %c0_i32 : i32, i32
  }
}

</mosaic_0001>

<llo_original>
// kernel: tpu_custom_call.1
$region0: #{tpu_custom_call.1}
  #allocation0 [shape = 'u32[]', space=smem, size = 0x4, offset = 0x4, fixed_abs, tag = 'smem constant byte address 0x4 - core index']
  #allocation1 [shape = 'u32[72,128]{1,0:T(1,128)}', space=vmem, size = 0x9000, scoped, tag = 'internal scratch']
  %s0 = inlined_call_operand.hbm [shape: f32[8,128], index: 0, kind: input, shape index: {}]
  %s1 = inlined_call_operand.hbm [shape: f32[8,128], index: 1, kind: output, shape index: {}]
  %s2 = sld [smem:[#allocation0]]
  $region22: #{tpu_custom_call.1} parent=0
    _
  %s4 = ssub.s32 1, %s2
  %s5 = scalar_select 0, %s4, %s2
  $region1: #{tpu_custom_call.1} parent=0
    #allocation2 [shape = 'u8[4096]{0}', space=vmem, size = 0x1000, scoped, tag = 'input window, operand 0, single buffered']
    #allocation3 [shape = 's32[1]{0}', space=sflag, size = 0x4, scoped, tag = 'scoped memory for tpu_custom_call.1']
    #allocation4 [shape = 's32[1]{0}', space=sflag, size = 0x4, scoped, tag = 'scoped memory for tpu_custom_call.1']
    #allocation5 [shape = 'u8[4096]{0}', space=vmem, size = 0x1000, scoped, tag = 'output window, operand 0, single buffered']
    %6 = vsyncpa [#allocation3], 0
    %7 = vsyncpa [#allocation4], 0
    // Predicated region
    $region2: #{tpu_custom_call.1} parent=1 // pred_check
      _
    $region3: #{tpu_custom_call.1} parent=1 // pred_check_branch
      %9 = sbr.rel (0) target = $region5
    $region4: #{tpu_custom_call.1} parent=1 // pred_region
      %s10 = sadd.s32 0, 0
      %p11 = scmp.lt.s32.totalorder %s10, 0
      %s12 = scalar_select %p11, %s10, 0
      %14 = vsyncadd [#allocation3], 0
      %s15 = smul.addr %s12, 8
      %s16 = scalar_lea.hbm %s0, %s15
      %s18 = sshll.u32 %s16, 4
      %s19 = int_to_ptr.hbm [resolvable:$true] %s18
      %s20 = sshll.u32 [#allocation2], 4
      %s21 = int_to_ptr.vmem [resolvable:$true] %s20
      %23 = dma.hbm_to_vmem [thread:$0]  %s19, 128, %s21, [#allocation3]
    $region5: #{tpu_custom_call.1} parent=1 // pred_fallthru
      _
    // Predicated region
    $region6: #{tpu_custom_call.1} parent=1 // pred_check
      _
    $region7: #{tpu_custom_call.1} parent=1 // pred_check_branch
      %25 = sbr.rel (0) target = $region9
    $region8: #{tpu_custom_call.1} parent=1 // pred_region
      %27 = dma.done [#allocation3], 128
    $region9: #{tpu_custom_call.1} parent=1 // pred_fallthru
      _
    %s28 = sadd.s32 0, 0
    %p29 = scmp.lt.s32.totalorder %s28, 0
    %s30 = scalar_select %p29, %s28, 0
    %p31 = scmp.eq.s32.totalorder 0, 0
    // Predicated region
    $region10: #{tpu_custom_call.1} parent=1 // pred_check
      %p32 = pneg %p31
    $region11: #{tpu_custom_call.1} parent=1 // pred_check_branch
      %34 = sbr.rel (%p32) target = $region13
    $region12: #{tpu_custom_call.1} parent=1 // pred_region
      %35 = vst [vmem:[#allocation5] sm:$0xff] 0.0
    $region13: #{tpu_custom_call.1} parent=1 // pred_fallthru
      _
    %v36 = vld [vmem:[#allocation2] sm:$0xff]
    %v37 = vmul.f32 %v36, %v36
    %v38 = vld [vmem:[#allocation5] sm:$0xff]
    %v39 = vadd.f32 %v37, 0.0
    %v40 = vadd.f32 %v38, %v39
    %41 = vst [vmem:[#allocation5] sm:$0xff] %v40
    // Predicated region
    $region14: #{tpu_custom_call.1} parent=1 // pred_check
      _
    $region15: #{tpu_custom_call.1} parent=1 // pred_check_branch
      %43 = sbr.rel (0) target = $region17
    $region16: #{tpu_custom_call.1} parent=1 // pred_region
      %45 = vsyncadd [#allocation4], 0
      %s47 = sshll.u32 [#allocation5], 4
      %s48 = int_to_ptr.vmem [resolvable:$true] %s47
      %s49 = sshll.u32 %s1, 4
      %s50 = int_to_ptr.hbm [resolvable:$true] %s49
      %52 = dma.vmem_to_hbm [thread:$0]  %s48, 128, %s50, [#allocation4]
    $region17: #{tpu_custom_call.1} parent=1 // pred_fallthru
      _
    // Predicated region
    $region18: #{tpu_custom_call.1} parent=1 // pred_check
      _
    $region19: #{tpu_custom_call.1} parent=1 // pred_check_branch
      %54 = sbr.rel (0) target = $region21
    $region20: #{tpu_custom_call.1} parent=1 // pred_region
      %56 = dma.done [#allocation4], 128
    $region21: #{tpu_custom_call.1} parent=1 // pred_fallthru
      _
    %57 = vsyncpa [#allocation3], 1
    %58 = vsyncpa [#allocation4], 1

</llo_original>
